<compile_context>
chip_gen: v5e
topology: v5e:2x2
jax: 0.10.0
libtpu: 0.0.40
codegen_flags: <defaults>
</compile_context>

<pallas_src>
import functools
import math

import jax
import jax.numpy as jnp
from jax.experimental import pallas as pl
from jax.experimental.pallas import tpu as pltpu

EPSILON = 1e-06
LOG_STD_MAX = 2.0
LOG_STD_MIN = -20.0
NN_LAYER_1 = 256
NN_LAYER_2 = 256
_HALF_LOG_2PI = 0.5 * math.log(2.0 * math.pi)
_HEAD_PAD = 128      # lane-aligned head width (mean lanes [0,128), log_std [128,256))
_OUT_LANES = 128     # packed output width


def _round_up(x, m):
    return ((x + m - 1) // m) * m


def _policy_kernel(eps_ref, state_ref, w1_ref, b1_ref, w2_ref, b2_ref,
                   wh_ref, bh_ref, out_ref, *, num_actions):
    A = num_actions
    x = state_ref[...]                                       # (tm, num_inputs) f32

    # Hidden layers (ReLU). Weights stored bf16 (halved HBM traffic); cast to
    # f32 so elementwise math + accumulation stays f32 (v5e VPU/EUP lack bf16).
    h1 = jnp.dot(x, w1_ref[...].astype(jnp.float32),
                 preferred_element_type=jnp.float32) + b1_ref[...]
    h1 = jnp.maximum(h1, 0.0)
    h2 = jnp.dot(h1, w2_ref[...].astype(jnp.float32),
                 preferred_element_type=jnp.float32) + b2_ref[...]
    h2 = jnp.maximum(h2, 0.0)

    # Fused, lane-aligned heads in one MXU pass: (tm, 256) = [mean_pad | log_std_pad].
    heads = jnp.dot(h2, wh_ref[...].astype(jnp.float32),
                    preferred_element_type=jnp.float32) + bh_ref[...]
    mean = heads[:, :_HEAD_PAD]                              # vreg-aligned split (free)
    log_std = jnp.clip(heads[:, _HEAD_PAD:], LOG_STD_MIN, LOG_STD_MAX)
    std = jnp.exp(log_std)

    # Single scalar N(0,1) sample broadcast over the whole tile (exactly what
    # torch's Normal(0,1).sample() does in the reference).
    eps = eps_ref[0]
    z = mean + std * eps
    action = jnp.tanh(z)

    # Normal(mean, std).log_prob(z) - log(1 - action^2 + EPSILON), summed over
    # the *real* action lanes.  Since (z - mean)/std == eps exactly, the
    # Gaussian quadratic term collapses to a per-row constant
    # A * (-0.5*eps^2 - 0.5*log(2*pi)).
    lane = jax.lax.broadcasted_iota(jnp.int32, action.shape, 1)
    act_mask = lane < A
    var_terms = -(log_std + jnp.log(1.0 - action * action + EPSILON))
    var_terms = jnp.where(act_mask, var_terms, 0.0)
    logp = jnp.sum(var_terms, axis=-1, keepdims=True)
    logp = logp + A * (-0.5 * eps * eps - _HALF_LOG_2PI)     # (tm, 1)

    # Lane-mask compose into the (tm, 128) output vreg (no concatenate /
    # lane-rotate XLU work): action in lanes [0,A), log_prob in lane A.
    out_ref[...] = jnp.where(act_mask, action,
                             jnp.where(lane == A, logp, 0.0)).astype(out_ref.dtype)


def prepare_params(params, num_actions):
    """One-time param prep: fuse + lane-align heads, cast big weights to bf16."""
    A = num_actions
    assert A + 1 <= _OUT_LANES, "packed output layout requires num_actions + 1 <= 128"
    wh = jnp.zeros((NN_LAYER_2, 2 * _HEAD_PAD), jnp.float32)
    wh = wh.at[:, :A].set(params["wm"])
    wh = wh.at[:, _HEAD_PAD:_HEAD_PAD + A].set(params["wls"])
    bh = jnp.zeros((1, 2 * _HEAD_PAD), jnp.float32)
    bh = bh.at[:, :A].set(params["bm"])
    bh = bh.at[:, _HEAD_PAD:_HEAD_PAD + A].set(params["bls"])
    return dict(
        w1=params["w1"].astype(jnp.bfloat16), b1=params["b1"],
        w2=params["w2"].astype(jnp.bfloat16), b2=params["b2"],
        wh=wh.astype(jnp.bfloat16), bh=bh,
    )


def policy_network_sac_forward(state, prepped, eps_scalar, *, num_actions, tm=512):
    """SAC policy forward pass in a single Pallas kernel.

    Args:
      state: (B, num_inputs) f32
      prepped: output of prepare_params (bf16 w1/w2/wh, f32 b1/b2/bh)
      eps_scalar: python float / 0-d array -- the single N(0,1) sample
      num_actions: action dim A
      tm: batch tile (rows per grid step)
    Returns:
      (action (B, A), log_prob (B, 1))
    """
    B, num_inputs = state.shape
    A = num_actions
    eps = jnp.asarray(eps_scalar, jnp.float32).reshape(1)

    # Batch tiling: sublane-aligned tile, pad B up to a multiple of it.
    tm = min(tm, _round_up(B, 8))
    Bp = _round_up(B, tm)
    if Bp != B:
        state = jnp.pad(state, ((0, Bp - B), (0, 0)))
    grid = (Bp // tm,)

    smem = pltpu.MemorySpace.SMEM
    in_specs = [
        pl.BlockSpec((1,), lambda i: (0,), memory_space=smem),        # eps (SMEM scalar)
        pl.BlockSpec((tm, num_inputs), lambda i: (i, 0)),             # state tile
        pl.BlockSpec(prepped["w1"].shape, lambda i: (0, 0)),          # weights pinned
        pl.BlockSpec(prepped["b1"].shape, lambda i: (0, 0)),
        pl.BlockSpec(prepped["w2"].shape, lambda i: (0, 0)),
        pl.BlockSpec(prepped["b2"].shape, lambda i: (0, 0)),
        pl.BlockSpec(prepped["wh"].shape, lambda i: (0, 0)),
        pl.BlockSpec(prepped["bh"].shape, lambda i: (0, 0)),
    ]
    out_specs = pl.BlockSpec((tm, _OUT_LANES), lambda i: (i, 0))

    # TODO(synk): for tiny production batches (B~8) the dominant cost is the
    # per-call weight DMA; keep weights VMEM-resident across calls via a
    # pl.get_global scratch (populated once) or a P10-style cross-call prefetch.
    out = pl.pallas_call(
        functools.partial(_policy_kernel, num_actions=A),
        out_shape=jax.ShapeDtypeStruct((Bp, _OUT_LANES), jnp.float32),
        grid=grid,
        in_specs=in_specs,
        out_specs=out_specs,
        compiler_params=pltpu.CompilerParams(
            dimension_semantics=("parallel",),       # shards batch tiles across v7x's 2 TCs
            vmem_limit_bytes=32 * 1024 * 1024,       # explicit; fits v5e/v6e/v7x scoped VMEM
        ),
    )(eps, state,
      prepped["w1"], prepped["b1"],
      prepped["w2"], prepped["b2"],
      prepped["wh"], prepped["bh"])

    action = out[:B, :A]
    log_prob = out[:B, A:A + 1]
    return action, log_prob


def init_params(key, num_inputs, num_actions):
    """Deterministic PyTorch-Linear-style init (U(-1/sqrt(fan_in), 1/sqrt(fan_in)))."""
    ks = jax.random.split(key, 8)

    def linear(kw, kb, fan_in, fan_out):
        bound = 1.0 / math.sqrt(fan_in)
        w = jax.random.uniform(kw, (fan_in, fan_out), jnp.float32, -bound, bound)
        b = jax.random.uniform(kb, (1, fan_out), jnp.float32, -bound, bound)
        return w, b

    w1, b1 = linear(ks[0], ks[1], num_inputs, NN_LAYER_1)
    w2, b2 = linear(ks[2], ks[3], NN_LAYER_1, NN_LAYER_2)
    wm, bm = linear(ks[4], ks[5], NN_LAYER_2, num_actions)
    wls, bls = linear(ks[6], ks[7], NN_LAYER_2, num_actions)
    return dict(w1=w1, b1=b1, w2=w2, b2=b2, wm=wm, bm=bm, wls=wls, bls=bls)


if __name__ == "__main__":
    key = jax.random.PRNGKey(0)
    k_params, k_state, k_eps = jax.random.split(key, 3)

    B = 8            # batch
    NUM_INPUTS = 16  # state dim
    NUM_ACTIONS = 4  # action dim

    raw_params = init_params(k_params, NUM_INPUTS, NUM_ACTIONS)
    prepped = prepare_params(raw_params, NUM_ACTIONS)        # one-time prep (hoisted)
    state = jax.random.normal(k_state, (B, NUM_INPUTS), jnp.float32)
    eps = jax.random.normal(k_eps, (), jnp.float32)          # the single N(0,1) sample

    action, log_prob = policy_network_sac_forward(
        state, prepped, eps, num_actions=NUM_ACTIONS)
    jax.block_until_ready((action, log_prob))

    # Pure-JAX reference (original, unoptimized formulation) using the exact
    # same (bf16-stored) weights the kernel sees.
    w1 = prepped["w1"].astype(jnp.float32)
    w2 = prepped["w2"].astype(jnp.float32)
    whf = prepped["wh"].astype(jnp.float32)
    wm = whf[:, :NUM_ACTIONS]
    wls = whf[:, _HEAD_PAD:_HEAD_PAD + NUM_ACTIONS]
    bm = prepped["bh"][:, :NUM_ACTIONS]
    bls = prepped["bh"][:, _HEAD_PAD:_HEAD_PAD + NUM_ACTIONS]

    h1 = jnp.maximum(state @ w1 + prepped["b1"], 0.0)
    h2 = jnp.maximum(h1 @ w2 + prepped["b2"], 0.0)
    mean = h2 @ wm + bm
    log_std = jnp.clip(h2 @ wls + bls, LOG_STD_MIN, LOG_STD_MAX)
    std = jnp.exp(log_std)
    z = mean + std * eps
    act_ref = jnp.tanh(z)
    lp_ref = (-0.5 * ((z - mean) / std) ** 2 - log_std - _HALF_LOG_2PI
              - jnp.log(1.0 - act_ref * act_ref + EPSILON)).sum(-1, keepdims=True)

    assert action.shape == (B, NUM_ACTIONS) and log_prob.shape == (B, 1)
    assert jnp.allclose(action, act_ref, atol=1e-3, rtol=1e-3), "action mismatch"
    assert jnp.allclose(log_prob, lp_ref, atol=5e-3, rtol=1e-3), "log_prob mismatch"

    print("KERNEL_OK")
</pallas_src>

<mosaic_0001>
module attributes {stable_mosaic.version = 11 : i64} {
  func.func @_policy_kernel(%arg0: i32, %arg1: memref<1xf32, #tpu.memory_space<smem>>, %arg2: memref<8x16xf32, #tpu.memory_space<vmem>>, %arg3: memref<16x256xbf16, #tpu.memory_space<vmem>>, %arg4: memref<1x256xf32, #tpu.memory_space<vmem>>, %arg5: memref<256x256xbf16, #tpu.memory_space<vmem>>, %arg6: memref<1x256xf32, #tpu.memory_space<vmem>>, %arg7: memref<256x256xbf16, #tpu.memory_space<vmem>>, %arg8: memref<1x256xf32, #tpu.memory_space<vmem>>, %arg9: memref<8x128xf32, #tpu.memory_space<vmem>>) attributes {dimension_semantics = [#tpu.dimension_semantics<parallel>], iteration_bounds = array<i64: 1>, scalar_prefetch = 0 : i64, scratch_operands = 0 : i64, tpu.core_type = #tpu.core_type<tc>, window_params = [{transform_indices = @transform_0, window_bounds = array<i64: 1>}, {transform_indices = @transform_1, window_bounds = array<i64: 8, 16>}, {pipeline_mode = #tpu.pipeline_mode<synchronous>, transform_indices = @transform_2, window_bounds = array<i64: 16, 256>}, {pipeline_mode = #tpu.pipeline_mode<synchronous>, transform_indices = @transform_3, window_bounds = array<i64: 1, 256>}, {pipeline_mode = #tpu.pipeline_mode<synchronous>, transform_indices = @transform_4, window_bounds = array<i64: 256, 256>}, {pipeline_mode = #tpu.pipeline_mode<synchronous>, transform_indices = @transform_5, window_bounds = array<i64: 1, 256>}, {pipeline_mode = #tpu.pipeline_mode<synchronous>, transform_indices = @transform_6, window_bounds = array<i64: 256, 256>}, {pipeline_mode = #tpu.pipeline_mode<synchronous>, transform_indices = @transform_7, window_bounds = array<i64: 1, 256>}, {transform_indices = @transform_8, window_bounds = array<i64: 8, 128>}]} {
    %c0 = arith.constant 0 : index
    %c0_0 = arith.constant 0 : index
    %0 = vector.load %arg2[%c0, %c0_0] : memref<8x16xf32, #tpu.memory_space<vmem>>, vector<8x16xf32>
    %c0_1 = arith.constant 0 : index
    %c0_2 = arith.constant 0 : index
    %1 = vector.load %arg3[%c0_1, %c0_2] : memref<16x256xbf16, #tpu.memory_space<vmem>>, vector<16x256xbf16>
    %2 = arith.extf %1 : vector<16x256xbf16> to vector<16x256xf32>
    %cst = arith.constant dense<0.000000e+00> : vector<8x256xf32>
    %3 = tpu.matmul %0, %2, %cst {dimension_numbers = #tpu.dot_dimension_numbers<[1], [0], [0], [1], [0, 0, 1, 1], [], []>} : vector<8x16xf32>, vector<16x256xf32>, vector<8x256xf32> -> vector<8x256xf32>
    %c0_3 = arith.constant 0 : index
    %c0_4 = arith.constant 0 : index
    %4 = vector.load %arg4[%c0_3, %c0_4] : memref<1x256xf32, #tpu.memory_space<vmem>>, vector<1x256xf32>
    %5 = vector.broadcast %4 : vector<1x256xf32> to vector<8x256xf32>
    %6 = arith.addf %3, %5 : vector<8x256xf32>
    %cst_5 = arith.constant 0.000000e+00 : f32
    %7 = vector.broadcast %cst_5 : f32 to vector<8x256xf32>
    %8 = arith.maximumf %6, %7 : vector<8x256xf32>
    %c0_6 = arith.constant 0 : index
    %c0_7 = arith.constant 0 : index
    %9 = vector.load %arg5[%c0_6, %c0_7] : memref<256x256xbf16, #tpu.memory_space<vmem>>, vector<256x256xbf16>
    %10 = arith.extf %9 : vector<256x256xbf16> to vector<256x256xf32>
    %cst_8 = arith.constant dense<0.000000e+00> : vector<8x256xf32>
    %11 = tpu.matmul %8, %10, %cst_8 {dimension_numbers = #tpu.dot_dimension_numbers<[1], [0], [0], [1], [0, 0, 1, 1], [], []>} : vector<8x256xf32>, vector<256x256xf32>, vector<8x256xf32> -> vector<8x256xf32>
    %c0_9 = arith.constant 0 : index
    %c0_10 = arith.constant 0 : index
    %12 = vector.load %arg6[%c0_9, %c0_10] : memref<1x256xf32, #tpu.memory_space<vmem>>, vector<1x256xf32>
    %13 = vector.broadcast %12 : vector<1x256xf32> to vector<8x256xf32>
    %14 = arith.addf %11, %13 : vector<8x256xf32>
    %cst_11 = arith.constant 0.000000e+00 : f32
    %15 = vector.broadcast %cst_11 : f32 to vector<8x256xf32>
    %16 = arith.maximumf %14, %15 : vector<8x256xf32>
    %c0_12 = arith.constant 0 : index
    %c0_13 = arith.constant 0 : index
    %17 = vector.load %arg7[%c0_12, %c0_13] : memref<256x256xbf16, #tpu.memory_space<vmem>>, vector<256x256xbf16>
    %18 = arith.extf %17 : vector<256x256xbf16> to vector<256x256xf32>
    %cst_14 = arith.constant dense<0.000000e+00> : vector<8x256xf32>
    %19 = tpu.matmul %16, %18, %cst_14 {dimension_numbers = #tpu.dot_dimension_numbers<[1], [0], [0], [1], [0, 0, 1, 1], [], []>} : vector<8x256xf32>, vector<256x256xf32>, vector<8x256xf32> -> vector<8x256xf32>
    %c0_15 = arith.constant 0 : index
    %c0_16 = arith.constant 0 : index
    %20 = vector.load %arg8[%c0_15, %c0_16] : memref<1x256xf32, #tpu.memory_space<vmem>>, vector<1x256xf32>
    %21 = vector.broadcast %20 : vector<1x256xf32> to vector<8x256xf32>
    %22 = arith.addf %19, %21 : vector<8x256xf32>
    %23 = vector.extract_strided_slice %22 {offsets = [0, 0], sizes = [8, 128], strides = [1, 1]} : vector<8x256xf32> to vector<8x128xf32>
    %24 = vector.extract_strided_slice %22 {offsets = [0, 128], sizes = [8, 128], strides = [1, 1]} : vector<8x256xf32> to vector<8x128xf32>
    %cst_17 = arith.constant -2.000000e+01 : f32
    %cst_18 = arith.constant 2.000000e+00 : f32
    %25 = vector.broadcast %cst_17 : f32 to vector<8x128xf32>
    %26 = arith.maximumf %25, %24 : vector<8x128xf32>
    %27 = vector.broadcast %cst_18 : f32 to vector<8x128xf32>
    %28 = arith.minimumf %27, %26 : vector<8x128xf32>
    %29 = math.exp %28 : vector<8x128xf32>
    %c0_19 = arith.constant 0 : index
    %30 = memref.load %arg1[%c0_19] : memref<1xf32, #tpu.memory_space<smem>>
    %31 = vector.broadcast %30 : f32 to vector<8x128xf32>
    %32 = arith.mulf %29, %31 : vector<8x128xf32>
    %33 = arith.addf %23, %32 : vector<8x128xf32>
    %34 = math.tanh %33 : vector<8x128xf32>
    %35 = tpu.iota {dimensions = array<i32: 1>} : vector<8x128xi32>
    %c4_i32 = arith.constant 4 : i32
    %36 = vector.broadcast %c4_i32 : i32 to vector<8x128xi32>
    %37 = arith.cmpi slt, %35, %36 : vector<8x128xi32>
    %38 = arith.mulf %34, %34 : vector<8x128xf32>
    %cst_20 = arith.constant 1.000000e+00 : f32
    %39 = vector.broadcast %cst_20 : f32 to vector<8x128xf32>
    %40 = arith.subf %39, %38 : vector<8x128xf32>
    %cst_21 = arith.constant 9.99999997E-7 : f32
    %41 = vector.broadcast %cst_21 : f32 to vector<8x128xf32>
    %42 = arith.addf %40, %41 : vector<8x128xf32>
    %43 = math.log %42 : vector<8x128xf32>
    %44 = arith.addf %28, %43 : vector<8x128xf32>
    %cst_22 = arith.constant 0.000000e+00 : f32
    %45 = vector.broadcast %cst_22 : f32 to vector<8x128xf32>
    %46 = arith.subf %45, %44 : vector<8x128xf32>
    %cst_23 = arith.constant 0.000000e+00 : f32
    %47 = vector.broadcast %cst_23 : f32 to vector<8x128xf32>
    %48 = arith.select %37, %46, %47 : vector<8x128xi1>, vector<8x128xf32>
    %cst_24 = arith.constant dense<0.000000e+00> : vector<8xf32>
    %49 = vector.multi_reduction <add>, %48, %cst_24 [1] : vector<8x128xf32> to vector<8xf32>
    %50 = vector.shape_cast %49 : vector<8xf32> to vector<8x1xf32>
    %cst_25 = arith.constant -5.000000e-01 : f32
    %51 = arith.mulf %cst_25, %30 : f32
    %52 = arith.mulf %51, %30 : f32
    %cst_26 = arith.constant 0.918938517 : f32
    %53 = arith.subf %52, %cst_26 : f32
    %cst_27 = arith.constant 4.000000e+00 : f32
    %54 = arith.mulf %cst_27, %53 : f32
    %55 = vector.broadcast %54 : f32 to vector<8x1xf32>
    %56 = arith.addf %50, %55 : vector<8x1xf32>
    %c4_i32_28 = arith.constant 4 : i32
    %57 = vector.broadcast %c4_i32_28 : i32 to vector<8x128xi32>
    %58 = arith.cmpi eq, %35, %57 : vector<8x128xi32>
    %cst_29 = arith.constant 0.000000e+00 : f32
    %59 = vector.shape_cast %56 : vector<8x1xf32> to vector<8x1xf32>
    %60 = vector.broadcast %59 : vector<8x1xf32> to vector<8x128xf32>
    %61 = vector.broadcast %cst_29 : f32 to vector<8x128xf32>
    %62 = arith.select %58, %60, %61 : vector<8x128xi1>, vector<8x128xf32>
    %63 = arith.select %37, %34, %62 : vector<8x128xi1>, vector<8x128xf32>
    %c0_30 = arith.constant 0 : index
    %c0_31 = arith.constant 0 : index
    %64 = vector.load %arg9[%c0_30, %c0_31] : memref<8x128xf32, #tpu.memory_space<vmem>>, vector<8x128xf32>
    tpu.vector_store %arg9[%c0_30, %c0_31], %63 {strides = array<i32>} : memref<8x128xf32, #tpu.memory_space<vmem>>, vector<8x128xf32>,
    return
  }
  func.func @transform_0(%arg0: i32) -> i32 {
    %c0_i32 = arith.constant 0 : i32
    %c0_i32_0 = arith.constant 0 : i32
    return %c0_i32 : i32
  }
  func.func @transform_1(%arg0: i32) -> (i32, i32) {
    %c0_i32 = arith.constant 0 : i32
    %c0_i32_0 = arith.constant 0 : i32
    return %arg0, %c0_i32 : i32, i32
  }
  func.func @transform_2(%arg0: i32) -> (i32, i32) {
    %c0_i32 = arith.constant 0 : i32
    %c0_i32_0 = arith.constant 0 : i32
    %c0_i32_1 = arith.constant 0 : i32
    return %c0_i32, %c0_i32_0 : i32, i32
  }
  func.func @transform_3(%arg0: i32) -> (i32, i32) {
    %c0_i32 = arith.constant 0 : i32
    %c0_i32_0 = arith.constant 0 : i32
    %c0_i32_1 = arith.constant 0 : i32
    return %c0_i32, %c0_i32_0 : i32, i32
  }
  func.func @transform_4(%arg0: i32) -> (i32, i32) {
    %c0_i32 = arith.constant 0 : i32
    %c0_i32_0 = arith.constant 0 : i32
    %c0_i32_1 = arith.constant 0 : i32
    return %c0_i32, %c0_i32_0 : i32, i32
  }
  func.func @transform_5(%arg0: i32) -> (i32, i32) {
    %c0_i32 = arith.constant 0 : i32
    %c0_i32_0 = arith.constant 0 : i32
    %c0_i32_1 = arith.constant 0 : i32
    return %c0_i32, %c0_i32_0 : i32, i32
  }
  func.func @transform_6(%arg0: i32) -> (i32, i32) {
    %c0_i32 = arith.constant 0 : i32
    %c0_i32_0 = arith.constant 0 : i32
    %c0_i32_1 = arith.constant 0 : i32
    return %c0_i32, %c0_i32_0 : i32, i32
  }
  func.func @transform_7(%arg0: i32) -> (i32, i32) {
    %c0_i32 = arith.constant 0 : i32
    %c0_i32_0 = arith.constant 0 : i32
    %c0_i32_1 = arith.constant 0 : i32
    return %c0_i32, %c0_i32_0 : i32, i32
  }
  func.func @transform_8(%arg0: i32) -> (i32, i32) {
    %c0_i32 = arith.constant 0 : i32
    %c0_i32_0 = arith.constant 0 : i32
    return %arg0, %c0_i32 : i32, i32
  }
}

</mosaic_0001>

<llo_original>
// kernel: tpu_custom_call.1
$region0: #{tpu_custom_call.1}
  #allocation0 [shape = 'u32[]', space=smem, size = 0x4, offset = 0x4, fixed_abs, tag = 'smem constant byte address 0x4 - core index']
  #allocation1 [shape = 'u32[72,128]{1,0:T(1,128)}', space=vmem, size = 0x9000, scoped, tag = 'internal scratch']
  #allocation2 [shape = 'f32[1]{0:T(128)S(6)}', space=smem, size = 0x200, scoped, tag = 'scoped memory for tpu_custom_call.1']
  %s0 = inlined_call_operand.<no memory space> [shape: f32[1], index: 0, kind: input, shape index: {}]
  %s1 = inlined_call_operand.hbm [shape: f32[8,16], index: 1, kind: input, shape index: {}]
  %s2 = inlined_call_operand.hbm [shape: bf16[16,256], index: 2, kind: input, shape index: {}]
  %s3 = inlined_call_operand.vmem [shape: f32[1,256], index: 3, kind: input, shape index: {}]
  %s4 = inlined_call_operand.hbm [shape: bf16[256,256], index: 4, kind: input, shape index: {}]
  %s5 = inlined_call_operand.vmem [shape: f32[1,256], index: 5, kind: input, shape index: {}]
  %s6 = inlined_call_operand.hbm [shape: bf16[256,256], index: 6, kind: input, shape index: {}]
  %s7 = inlined_call_operand.vmem [shape: f32[1,256], index: 7, kind: input, shape index: {}]
  %s8 = inlined_call_operand.hbm [shape: f32[8,128], index: 8, kind: output, shape index: {}]
  %s9 = sld [smem:[#allocation0]]
  $region58: #{tpu_custom_call.1} parent=0
    _
  %s11 = ssub.s32 1, %s9
  %s12 = scalar_select 0, %s11, %s9
  %13 = sst [smem:[#allocation2]] %s0
  $region1: #{tpu_custom_call.1} parent=0
    #allocation3 [shape = 'u8[4096]{0}', space=vmem, size = 0x1000, scoped, tag = 'input window, operand 1, single buffered']
    #allocation4 [shape = 's32[1]{0}', space=sflag, size = 0x4, scoped, tag = 'scoped memory for tpu_custom_call.1']
    #allocation5 [shape = 's32[1]{0}', space=sflag, size = 0x4, scoped, tag = 'scoped memory for tpu_custom_call.1']
    #allocation6 [shape = 'u8[8192]{0}', space=vmem, size = 0x2000, scoped, tag = 'input window, operand 2, single buffered']
    #allocation7 [shape = 's32[1]{0}', space=sflag, size = 0x4, scoped, tag = 'scoped memory for tpu_custom_call.1']
    #allocation8 [shape = 'u8[131072]{0}', space=vmem, size = 0x20000, scoped, tag = 'input window, operand 4, single buffered']
    #allocation9 [shape = 'u8[131072]{0}', space=vmem, size = 0x20000, scoped, tag = 'input window, operand 6, single buffered']
    #allocation10 [shape = 's32[1]{0}', space=sflag, size = 0x4, scoped, tag = 'scoped memory for tpu_custom_call.1']
    #allocation11 [shape = 'u8[4096]{0}', space=vmem, size = 0x1000, scoped, tag = 'output window, operand 0, single buffered']
    %14 = vsyncpa [#allocation4], 0
    %15 = vsyncpa [#allocation7], 0
    %16 = vsyncpa [#allocation10], 0
    %17 = vsyncpa [#allocation5], 0
    // Predicated region
    $region2: #{tpu_custom_call.1} parent=1 // pred_check
      _
    $region3: #{tpu_custom_call.1} parent=1 // pred_check_branch
      %19 = sbr.rel (0) target = $region5
    $region4: #{tpu_custom_call.1} parent=1 // pred_region
      _
    $region5: #{tpu_custom_call.1} parent=1 // pred_fallthru
      _
    // Predicated region
    $region6: #{tpu_custom_call.1} parent=1 // pred_check
      _
    $region7: #{tpu_custom_call.1} parent=1 // pred_check_branch
      %21 = sbr.rel (0) target = $region9
    $region8: #{tpu_custom_call.1} parent=1 // pred_region
      %23 = vsyncadd [#allocation4], 0
      %s25 = sshll.u32 %s1, 4
      %s26 = int_to_ptr.hbm [resolvable:$true] %s25
      %s27 = sshll.u32 [#allocation3], 4
      %s28 = int_to_ptr.vmem [resolvable:$true] %s27
      %30 = dma.hbm_to_vmem [thread:$0]  %s26, 128, %s28, [#allocation4]
    $region9: #{tpu_custom_call.1} parent=1 // pred_fallthru
      _
    // Predicated region
    $region10: #{tpu_custom_call.1} parent=1 // pred_check
      _
    $region11: #{tpu_custom_call.1} parent=1 // pred_check_branch
      %32 = sbr.rel (0) target = $region13
    $region12: #{tpu_custom_call.1} parent=1 // pred_region
      %34 = vsyncadd [#allocation7], 0
      %s35 = sshll.u32 %s2, 4
      %s36 = int_to_ptr.hbm [resolvable:$true] %s35
      %s37 = sshll.u32 [#allocation6], 4
      %s38 = int_to_ptr.vmem [resolvable:$true] %s37
      %43 = dma.hbm_to_vmem [thread:$0]  %s36, 256, %s38, [#allocation7], 128, 128, 8
    $region13: #{tpu_custom_call.1} parent=1 // pred_fallthru
      _
    // Predicated region
    $region14: #{tpu_custom_call.1} parent=1 // pred_check
      _
    $region15: #{tpu_custom_call.1} parent=1 // pred_check_branch
      %45 = sbr.rel (0) target = $region17
    $region16: #{tpu_custom_call.1} parent=1 // pred_region
      _
    $region17: #{tpu_custom_call.1} parent=1 // pred_fallthru
      _
    // Predicated region
    $region18: #{tpu_custom_call.1} parent=1 // pred_check
      _
    $region19: #{tpu_custom_call.1} parent=1 // pred_check_branch
      %47 = sbr.rel (0) target = $region21
    $region20: #{tpu_custom_call.1} parent=1 // pred_region
      %49 = vsyncadd [#allocation7], 0
      %s50 = sshll.u32 %s4, 4
      %s51 = int_to_ptr.hbm [resolvable:$true] %s50
      %s52 = sshll.u32 [#allocation8], 4
      %s53 = int_to_ptr.vmem [resolvable:$true] %s52
      %58 = dma.hbm_to_vmem [thread:$0]  %s51, 4096, %s53, [#allocation7], 128, 128, 8
    $region21: #{tpu_custom_call.1} parent=1 // pred_fallthru
      _
    // Predicated region
    $region22: #{tpu_custom_call.1} parent=1 // pred_check
      _
    $region23: #{tpu_custom_call.1} parent=1 // pred_check_branch
      %60 = sbr.rel (0) target = $region25
    $region24: #{tpu_custom_call.1} parent=1 // pred_region
      _
    $region25: #{tpu_custom_call.1} parent=1 // pred_fallthru
      _
    // Predicated region
    $region26: #{tpu_custom_call.1} parent=1 // pred_check
      _
    $region27: #{tpu_custom_call.1} parent=1 // pred_check_branch
      %62 = sbr.rel (0) target = $region29
    $region28: #{tpu_custom_call.1} parent=1 // pred_region
      %64 = vsyncadd [#allocation10], 0
      %s65 = sshll.u32 %s6, 4
      %s66 = int_to_ptr.hbm [resolvable:$true] %s65
      %s67 = sshll.u32 [#allocation9], 4
      %s68 = int_to_ptr.vmem [resolvable:$true] %s67
      %73 = dma.hbm_to_vmem [thread:$0]  %s66, 4096, %s68, [#allocation10], 128, 128, 8
    $region29: #{tpu_custom_call.1} parent=1 // pred_fallthru
      _
    // Predicated region
    $region30: #{tpu_custom_call.1} parent=1 // pred_check
      _
    $region31: #{tpu_custom_call.1} parent=1 // pred_check_branch
      %75 = sbr.rel (0) target = $region33
    $region32: #{tpu_custom_call.1} parent=1 // pred_region
      _
    $region33: #{tpu_custom_call.1} parent=1 // pred_fallthru
      _
    // Predicated region
    $region34: #{tpu_custom_call.1} parent=1 // pred_check
      _
    $region35: #{tpu_custom_call.1} parent=1 // pred_check_branch
      %77 = sbr.rel (0) target = $region37
    $region36: #{tpu_custom_call.1} parent=1 // pred_region
      %79 = dma.done [#allocation4], 128
    $region37: #{tpu_custom_call.1} parent=1 // pred_fallthru
      _
    // Predicated region
    $region38: #{tpu_custom_call.1} parent=1 // pred_check
      _
    $region39: #{tpu_custom_call.1} parent=1 // pred_check_branch
      %81 = sbr.rel (0) target = $region41
    $region40: #{tpu_custom_call.1} parent=1 // pred_region
      %83 = dma.done [#allocation7], 256
    $region41: #{tpu_custom_call.1} parent=1 // pred_fallthru
      _
    // Predicated region
    $region42: #{tpu_custom_call.1} parent=1 // pred_check
      _
    $region43: #{tpu_custom_call.1} parent=1 // pred_check_branch
      %85 = sbr.rel (0) target = $region45
    $region44: #{tpu_custom_call.1} parent=1 // pred_region
      %87 = dma.done [#allocation7], 4096
    $region45: #{tpu_custom_call.1} parent=1 // pred_fallthru
      _
    // Predicated region
    $region46: #{tpu_custom_call.1} parent=1 // pred_check
      _
    $region47: #{tpu_custom_call.1} parent=1 // pred_check_branch
      %89 = sbr.rel (0) target = $region49
    $region48: #{tpu_custom_call.1} parent=1 // pred_region
      %91 = dma.done [#allocation10], 4096
    $region49: #{tpu_custom_call.1} parent=1 // pred_fallthru
      _
    %v92 = vld [vmem:[#allocation3] sm:$0xff]
    %v93 = vld [vmem:[#allocation6] sm:$0xff]
    %v94 = vld [vmem:[#allocation6 + $0x8] sm:$0xff]
    %v95 = vunpack.c.l.bf16 %v93
    %v96 = vunpack.c.h.bf16 %v93
    %v97 = vunpack.c.l.bf16 %v94
    %v98 = vunpack.c.h.bf16 %v94
    %v99 = vld [vmem:[%s3] sm:$0x3]
    %v101 = vperm.slane %v99, 0
    %v102 = vperm.slane %v99, 1
    %vm105 = vcmask 130048
    %v107 = vsel %vm105, %v92, 0
    %109 = vmatpush.msra.mxu0 0.0
    %110 = vmatpush.msra.mxu0 0.0
    %111 = vmatpush.msra.mxu0 0.0
    %112 = vmatpush.msra.mxu0 0.0
    %113 = vmatpush.msra.mxu0 0.0
    %114 = vmatpush.msra.mxu0 0.0
    %115 = vmatpush.msra.mxu0 0.0
    %116 = vmatpush.msra.mxu0 0.0
    %117 = vmatpush.msra.mxu0 0.0
    %118 = vmatpush.msra.mxu0 0.0
    %119 = vmatpush.msra.mxu0 0.0
    %120 = vmatpush.msra.mxu0 0.0
    %121 = vmatpush.msra.mxu0 0.0
    %122 = vmatpush.msra.mxu0 0.0
    %123 = vmatpush.msra.mxu0 %v97
    %124 = vmatpush.msra.mxu0 %v95
    %125 = vmatmul.f32.gmra.mxu0 %v107
    %v126 = vpop.f32.mrf.mxu0
    %v127 = vadd.f32 %v101, %v126
    %128 = vdwg.mxu0
    %129 = vmatpush.msra.mxu0 0.0
    %130 = vmatpush.msra.mxu0 0.0
    %131 = vmatpush.msra.mxu0 0.0
    %132 = vmatpush.msra.mxu0 0.0
    %133 = vmatpush.msra.mxu0 0.0
    %134 = vmatpush.msra.mxu0 0.0
    %135 = vmatpush.msra.mxu0 0.0
    %136 = vmatpush.msra.mxu0 0.0
    %137 = vmatpush.msra.mxu0 0.0
    %138 = vmatpush.msra.mxu0 0.0
    %139 = vmatpush.msra.mxu0 0.0
    %140 = vmatpush.msra.mxu0 0.0
    %141 = vmatpush.msra.mxu0 0.0
    %142 = vmatpush.msra.mxu0 0.0
    %143 = vmatpush.msra.mxu0 %v98
    %144 = vmatpush.msra.mxu0 %v96
    %145 = vmatmul.f32.gmra.mxu0 %v107
    %v146 = vpop.f32.mrf.mxu0
    %v147 = vadd.f32 %v102, %v146
    %148 = vdwg.mxu0
    %v149 = vmax.f32 %v127, 0.0
    %v150 = vmax.f32 %v147, 0.0
    %v151 = vld [vmem:[#allocation8] sm:$0xff]
    %v152 = vld [vmem:[#allocation8 + $0x8] sm:$0xff]
    %v153 = vld [vmem:[#allocation8 + $0x10] sm:$0xff]
    %v154 = vld [vmem:[#allocation8 + $0x18] sm:$0xff]
    %v155 = vld [vmem:[#allocation8 + $0x20] sm:$0xff]
    %v156 = vld [vmem:[#allocation8 + $0x28] sm:$0xff]
    %v157 = vld [vmem:[#allocation8 + $0x30] sm:$0xff]
    %v158 = vld [vmem:[#allocation8 + $0x38] sm:$0xff]
    %v159 = vld [vmem:[#allocation8 + $0x40] sm:$0xff]
    %v160 = vld [vmem:[#allocation8 + $0x48] sm:$0xff]
    %v161 = vld [vmem:[#allocation8 + $0x50] sm:$0xff]
    %v162 = vld [vmem:[#allocation8 + $0x58] sm:$0xff]
    %v163 = vld [vmem:[#allocation8 + $0x60] sm:$0xff]
    %v164 = vld [vmem:[#allocation8 + $0x68] sm:$0xff]
    %v165 = vld [vmem:[#allocation8 + $0x70] sm:$0xff]
    %v166 = vld [vmem:[#allocation8 + $0x78] sm:$0xff]
    %v167 = vld [vmem:[#allocation8 + $0x80] sm:$0xff]
    %v168 = vld [vmem:[#allocation8 + $0x88] sm:$0xff]
    %v169 = vld [vmem:[#allocation8 + $0x90] sm:$0xff]
    %v170 = vld [vmem:[#allocation8 + $0x98] sm:$0xff]
    %v171 = vld [vmem:[#allocation8 + $0xa0] sm:$0xff]
    %v172 = vld [vmem:[#allocation8 + $0xa8] sm:$0xff]
    %v173 = vld [vmem:[#allocation8 + $0xb0] sm:$0xff]
    %v174 = vld [vmem:[#allocation8 + $0xb8] sm:$0xff]
    %v175 = vld [vmem:[#allocation8 + $0xc0] sm:$0xff]
    %v176 = vld [vmem:[#allocation8 + $0xc8] sm:$0xff]
    %v177 = vld [vmem:[#allocation8 + $0xd0] sm:$0xff]
    %v178 = vld [vmem:[#allocation8 + $0xd8] sm:$0xff]
    %v179 = vld [vmem:[#allocation8 + $0xe0] sm:$0xff]
    %v180 = vld [vmem:[#allocation8 + $0xe8] sm:$0xff]
    %v181 = vld [vmem:[#allocation8 + $0xf0] sm:$0xff]
    %v182 = vld [vmem:[#allocation8 + $0xf8] sm:$0xff]
    %v183 = vunpack.c.l.bf16 %v151
    %v184 = vunpack.c.h.bf16 %v151
    %v185 = vunpack.c.l.bf16 %v152
    %v186 = vunpack.c.h.bf16 %v152
    %v187 = vunpack.c.l.bf16 %v153
    %v188 = vunpack.c.h.bf16 %v153
    %v189 = vunpack.c.l.bf16 %v154
    %v190 = vunpack.c.h.bf16 %v154
    %v191 = vunpack.c.l.bf16 %v155
    %v192 = vunpack.c.h.bf16 %v155
    %v193 = vunpack.c.l.bf16 %v156
    %v194 = vunpack.c.h.bf16 %v156
    %v195 = vunpack.c.l.bf16 %v157
    %v196 = vunpack.c.h.bf16 %v157
    %v197 = vunpack.c.l.bf16 %v158
    %v198 = vunpack.c.h.bf16 %v158
    %v199 = vunpack.c.l.bf16 %v159
    %v200 = vunpack.c.h.bf16 %v159
    %v201 = vunpack.c.l.bf16 %v160
    %v202 = vunpack.c.h.bf16 %v160
    %v203 = vunpack.c.l.bf16 %v161
    %v204 = vunpack.c.h.bf16 %v161
    %v205 = vunpack.c.l.bf16 %v162
    %v206 = vunpack.c.h.bf16 %v162
    %v207 = vunpack.c.l.bf16 %v163
    %v208 = vunpack.c.h.bf16 %v163
    %v209 = vunpack.c.l.bf16 %v164
    %v210 = vunpack.c.h.bf16 %v164
    %v211 = vunpack.c.l.bf16 %v165
    %v212 = vunpack.c.h.bf16 %v165
    %v213 = vunpack.c.l.bf16 %v166
    %v214 = vunpack.c.h.bf16 %v166
    %v215 = vunpack.c.l.bf16 %v167
    %v216 = vunpack.c.h.bf16 %v167
    %v217 = vunpack.c.l.bf16 %v168
    %v218 = vunpack.c.h.bf16 %v168
    %v219 = vunpack.c.l.bf16 %v169
    %v220 = vunpack.c.h.bf16 %v169
    %v221 = vunpack.c.l.bf16 %v170
    %v222 = vunpack.c.h.bf16 %v170
    %v223 = vunpack.c.l.bf16 %v171
    %v224 = vunpack.c.h.bf16 %v171
    %v225 = vunpack.c.l.bf16 %v172
    %v226 = vunpack.c.h.bf16 %v172
    %v227 = vunpack.c.l.bf16 %v173
    %v228 = vunpack.c.h.bf16 %v173
    %v229 = vunpack.c.l.bf16 %v174
    %v230 = vunpack.c.h.bf16 %v174
    %v231 = vunpack.c.l.bf16 %v175
    %v232 = vunpack.c.h.bf16 %v175
    %v233 = vunpack.c.l.bf16 %v176
    %v234 = vunpack.c.h.bf16 %v176
    %v235 = vunpack.c.l.bf16 %v177
    %v236 = vunpack.c.h.bf16 %v177
    %v237 = vunpack.c.l.bf16 %v178
    %v238 = vunpack.c.h.bf16 %v178
    %v239 = vunpack.c.l.bf16 %v179
    %v240 = vunpack.c.h.bf16 %v179
    %v241 = vunpack.c.l.bf16 %v180
    %v242 = vunpack.c.h.bf16 %v180
    %v243 = vunpack.c.l.bf16 %v181
    %v244 = vunpack.c.h.bf16 %v181
    %v245 = vunpack.c.l.bf16 %v182
    %v246 = vunpack.c.h.bf16 %v182
    %v247 = vld [vmem:[%s5] sm:$0x3]
    %v249 = vperm.slane %v247, 0
    %v250 = vperm.slane %v247, 1
    %253 = vmatpush.msra.mxu0 %v213
    %254 = vmatpush.msra.mxu0 %v211
    %255 = vmatpush.msra.mxu0 %v209
    %256 = vmatpush.msra.mxu0 %v207
    %257 = vmatpush.msra.mxu0 %v205
    %258 = vmatpush.msra.mxu0 %v203
    %259 = vmatpush.msra.mxu0 %v201
    %260 = vmatpush.msra.mxu0 %v199
    %261 = vmatpush.msra.mxu0 %v197
    %262 = vmatpush.msra.mxu0 %v195
    %263 = vmatpush.msra.mxu0 %v193
    %264 = vmatpush.msra.mxu0 %v191
    %265 = vmatpush.msra.mxu0 %v189
    %266 = vmatpush.msra.mxu0 %v187
    %267 = vmatpush.msra.mxu0 %v185
    %268 = vmatpush.msra.mxu0 %v183
    %269 = vmatmul.f32.gmra.mxu0 %v149
    %v270 = vpop.f32.mrf.mxu0
    %v271 = vadd.f32 %v249, %v270
    %272 = vdwg.mxu0
    %273 = vmatpush.msra.mxu0 %v245
    %274 = vmatpush.msra.mxu0 %v243
    %275 = vmatpush.msra.mxu0 %v241
    %276 = vmatpush.msra.mxu0 %v239
    %277 = vmatpush.msra.mxu0 %v237
    %278 = vmatpush.msra.mxu0 %v235
    %279 = vmatpush.msra.mxu0 %v233
    %280 = vmatpush.msra.mxu0 %v231
    %281 = vmatpush.msra.mxu0 %v229
    %282 = vmatpush.msra.mxu0 %v227
    %283 = vmatpush.msra.mxu0 %v225
    %284 = vmatpush.msra.mxu0 %v223
    %285 = vmatpush.msra.mxu0 %v221
    %286 = vmatpush.msra.mxu0 %v219
    %287 = vmatpush.msra.mxu0 %v217
    %288 = vmatpush.msra.mxu0 %v215
    %289 = vmatmul.f32.gmra.mxu0 %v150
    %v290 = vpop.f32.mrf.mxu0
    %v291 = vadd.f32 %v271, %v290
    %292 = vdwg.mxu0
    %293 = vmatpush.msra.mxu0 %v214
    %294 = vmatpush.msra.mxu0 %v212
    %295 = vmatpush.msra.mxu0 %v210
    %296 = vmatpush.msra.mxu0 %v208
    %297 = vmatpush.msra.mxu0 %v206
    %298 = vmatpush.msra.mxu0 %v204
    %299 = vmatpush.msra.mxu0 %v202
    %300 = vmatpush.msra.mxu0 %v200
    %301 = vmatpush.msra.mxu0 %v198
    %302 = vmatpush.msra.mxu0 %v196
    %303 = vmatpush.msra.mxu0 %v194
    %304 = vmatpush.msra.mxu0 %v192
    %305 = vmatpush.msra.mxu0 %v190
    %306 = vmatpush.msra.mxu0 %v188
    %307 = vmatpush.msra.mxu0 %v186
    %308 = vmatpush.msra.mxu0 %v184
    %309 = vmatmul.f32.gmra.mxu0 %v149
    %v310 = vpop.f32.mrf.mxu0
    %v311 = vadd.f32 %v250, %v310
    %312 = vdwg.mxu0
    %313 = vmatpush.msra.mxu0 %v246
    %314 = vmatpush.msra.mxu0 %v244
    %315 = vmatpush.msra.mxu0 %v242
    %316 = vmatpush.msra.mxu0 %v240
    %317 = vmatpush.msra.mxu0 %v238
    %318 = vmatpush.msra.mxu0 %v236
    %319 = vmatpush.msra.mxu0 %v234
    %320 = vmatpush.msra.mxu0 %v232
    %321 = vmatpush.msra.mxu0 %v230
    %322 = vmatpush.msra.mxu0 %v228
    %323 = vmatpush.msra.mxu0 %v226
    %324 = vmatpush.msra.mxu0 %v224
    %325 = vmatpush.msra.mxu0 %v222
    %326 = vmatpush.msra.mxu0 %v220
    %327 = vmatpush.msra.mxu0 %v218
    %328 = vmatpush.msra.mxu0 %v216
    %329 = vmatmul.f32.gmra.mxu0 %v150
    %v330 = vpop.f32.mrf.mxu0
    %v331 = vadd.f32 %v311, %v330
    %332 = vdwg.mxu0
    %v333 = vmax.f32 %v291, 0.0
    %v334 = vmax.f32 %v331, 0.0
    %v335 = vld [vmem:[#allocation9] sm:$0xff]
    %v336 = vld [vmem:[#allocation9 + $0x8] sm:$0xff]
    %v337 = vld [vmem:[#allocation9 + $0x10] sm:$0xff]
    %v338 = vld [vmem:[#allocation9 + $0x18] sm:$0xff]
    %v339 = vld [vmem:[#allocation9 + $0x20] sm:$0xff]
    %v340 = vld [vmem:[#allocation9 + $0x28] sm:$0xff]
    %v341 = vld [vmem:[#allocation9 + $0x30] sm:$0xff]
    %v342 = vld [vmem:[#allocation9 + $0x38] sm:$0xff]
    %v343 = vld [vmem:[#allocation9 + $0x40] sm:$0xff]
    %v344 = vld [vmem:[#allocation9 + $0x48] sm:$0xff]
    %v345 = vld [vmem:[#allocation9 + $0x50] sm:$0xff]
    %v346 = vld [vmem:[#allocation9 + $0x58] sm:$0xff]
    %v347 = vld [vmem:[#allocation9 + $0x60] sm:$0xff]
    %v348 = vld [vmem:[#allocation9 + $0x68] sm:$0xff]
    %v349 = vld [vmem:[#allocation9 + $0x70] sm:$0xff]
    %v350 = vld [vmem:[#allocation9 + $0x78] sm:$0xff]
    %v351 = vld [vmem:[#allocation9 + $0x80] sm:$0xff]
    %v352 = vld [vmem:[#allocation9 + $0x88] sm:$0xff]
    %v353 = vld [vmem:[#allocation9 + $0x90] sm:$0xff]
    %v354 = vld [vmem:[#allocation9 + $0x98] sm:$0xff]
    %v355 = vld [vmem:[#allocation9 + $0xa0] sm:$0xff]
    %v356 = vld [vmem:[#allocation9 + $0xa8] sm:$0xff]
    %v357 = vld [vmem:[#allocation9 + $0xb0] sm:$0xff]
    %v358 = vld [vmem:[#allocation9 + $0xb8] sm:$0xff]
    %v359 = vld [vmem:[#allocation9 + $0xc0] sm:$0xff]
    %v360 = vld [vmem:[#allocation9 + $0xc8] sm:$0xff]
    %v361 = vld [vmem:[#allocation9 + $0xd0] sm:$0xff]
    %v362 = vld [vmem:[#allocation9 + $0xd8] sm:$0xff]
    %v363 = vld [vmem:[#allocation9 + $0xe0] sm:$0xff]
    %v364 = vld [vmem:[#allocation9 + $0xe8] sm:$0xff]
    %v365 = vld [vmem:[#allocation9 + $0xf0] sm:$0xff]
    %v366 = vld [vmem:[#allocation9 + $0xf8] sm:$0xff]
    %v367 = vunpack.c.l.bf16 %v335
    %v368 = vunpack.c.h.bf16 %v335
    %v369 = vunpack.c.l.bf16 %v336
    %v370 = vunpack.c.h.bf16 %v336
    %v371 = vunpack.c.l.bf16 %v337
    %v372 = vunpack.c.h.bf16 %v337
    %v373 = vunpack.c.l.bf16 %v338
    %v374 = vunpack.c.h.bf16 %v338
    %v375 = vunpack.c.l.bf16 %v339
    %v376 = vunpack.c.h.bf16 %v339
    %v377 = vunpack.c.l.bf16 %v340
    %v378 = vunpack.c.h.bf16 %v340
    %v379 = vunpack.c.l.bf16 %v341
    %v380 = vunpack.c.h.bf16 %v341
    %v381 = vunpack.c.l.bf16 %v342
    %v382 = vunpack.c.h.bf16 %v342
    %v383 = vunpack.c.l.bf16 %v343
    %v384 = vunpack.c.h.bf16 %v343
    %v385 = vunpack.c.l.bf16 %v344
    %v386 = vunpack.c.h.bf16 %v344
    %v387 = vunpack.c.l.bf16 %v345
    %v388 = vunpack.c.h.bf16 %v345
    %v389 = vunpack.c.l.bf16 %v346
    %v390 = vunpack.c.h.bf16 %v346
    %v391 = vunpack.c.l.bf16 %v347
    %v392 = vunpack.c.h.bf16 %v347
    %v393 = vunpack.c.l.bf16 %v348
    %v394 = vunpack.c.h.bf16 %v348
    %v395 = vunpack.c.l.bf16 %v349
    %v396 = vunpack.c.h.bf16 %v349
    %v397 = vunpack.c.l.bf16 %v350
    %v398 = vunpack.c.h.bf16 %v350
    %v399 = vunpack.c.l.bf16 %v351
    %v400 = vunpack.c.h.bf16 %v351
    %v401 = vunpack.c.l.bf16 %v352
    %v402 = vunpack.c.h.bf16 %v352
    %v403 = vunpack.c.l.bf16 %v353
    %v404 = vunpack.c.h.bf16 %v353
    %v405 = vunpack.c.l.bf16 %v354
    %v406 = vunpack.c.h.bf16 %v354
    %v407 = vunpack.c.l.bf16 %v355
    %v408 = vunpack.c.h.bf16 %v355
    %v409 = vunpack.c.l.bf16 %v356
    %v410 = vunpack.c.h.bf16 %v356
    %v411 = vunpack.c.l.bf16 %v357
    %v412 = vunpack.c.h.bf16 %v357
    %v413 = vunpack.c.l.bf16 %v358
    %v414 = vunpack.c.h.bf16 %v358
    %v415 = vunpack.c.l.bf16 %v359
    %v416 = vunpack.c.h.bf16 %v359
    %v417 = vunpack.c.l.bf16 %v360
    %v418 = vunpack.c.h.bf16 %v360
    %v419 = vunpack.c.l.bf16 %v361
    %v420 = vunpack.c.h.bf16 %v361
    %v421 = vunpack.c.l.bf16 %v362
    %v422 = vunpack.c.h.bf16 %v362
    %v423 = vunpack.c.l.bf16 %v363
    %v424 = vunpack.c.h.bf16 %v363
    %v425 = vunpack.c.l.bf16 %v364
    %v426 = vunpack.c.h.bf16 %v364
    %v427 = vunpack.c.l.bf16 %v365
    %v428 = vunpack.c.h.bf16 %v365
    %v429 = vunpack.c.l.bf16 %v366
    %v430 = vunpack.c.h.bf16 %v366
    %v431 = vld [vmem:[%s7] sm:$0x3]
    %v433 = vperm.slane %v431, 0
    %v434 = vperm.slane %v431, 1
    %437 = vmatpush.msra.mxu0 %v397
    %438 = vmatpush.msra.mxu0 %v395
    %439 = vmatpush.msra.mxu0 %v393
    %440 = vmatpush.msra.mxu0 %v391
    %441 = vmatpush.msra.mxu0 %v389
    %442 = vmatpush.msra.mxu0 %v387
    %443 = vmatpush.msra.mxu0 %v385
    %444 = vmatpush.msra.mxu0 %v383
    %445 = vmatpush.msra.mxu0 %v381
    %446 = vmatpush.msra.mxu0 %v379
    %447 = vmatpush.msra.mxu0 %v377
    %448 = vmatpush.msra.mxu0 %v375
    %449 = vmatpush.msra.mxu0 %v373
    %450 = vmatpush.msra.mxu0 %v371
    %451 = vmatpush.msra.mxu0 %v369
    %452 = vmatpush.msra.mxu0 %v367
    %453 = vmatmul.f32.gmra.mxu0 %v333
    %v454 = vpop.f32.mrf.mxu0
    %v455 = vadd.f32 %v433, %v454
    %456 = vdwg.mxu0
    %457 = vmatpush.msra.mxu0 %v429
    %458 = vmatpush.msra.mxu0 %v427
    %459 = vmatpush.msra.mxu0 %v425
    %460 = vmatpush.msra.mxu0 %v423
    %461 = vmatpush.msra.mxu0 %v421
    %462 = vmatpush.msra.mxu0 %v419
    %463 = vmatpush.msra.mxu0 %v417
    %464 = vmatpush.msra.mxu0 %v415
    %465 = vmatpush.msra.mxu0 %v413
    %466 = vmatpush.msra.mxu0 %v411
    %467 = vmatpush.msra.mxu0 %v409
    %468 = vmatpush.msra.mxu0 %v407
    %469 = vmatpush.msra.mxu0 %v405
    %470 = vmatpush.msra.mxu0 %v403
    %471 = vmatpush.msra.mxu0 %v401
    %472 = vmatpush.msra.mxu0 %v399
    %473 = vmatmul.f32.gmra.mxu0 %v334
    %v474 = vpop.f32.mrf.mxu0
    %v475 = vadd.f32 %v455, %v474
    %476 = vdwg.mxu0
    %477 = vmatpush.msra.mxu0 %v398
    %478 = vmatpush.msra.mxu0 %v396
    %479 = vmatpush.msra.mxu0 %v394
    %480 = vmatpush.msra.mxu0 %v392
    %481 = vmatpush.msra.mxu0 %v390
    %482 = vmatpush.msra.mxu0 %v388
    %483 = vmatpush.msra.mxu0 %v386
    %484 = vmatpush.msra.mxu0 %v384
    %485 = vmatpush.msra.mxu0 %v382
    %486 = vmatpush.msra.mxu0 %v380
    %487 = vmatpush.msra.mxu0 %v378
    %488 = vmatpush.msra.mxu0 %v376
    %489 = vmatpush.msra.mxu0 %v374
    %490 = vmatpush.msra.mxu0 %v372
    %491 = vmatpush.msra.mxu0 %v370
    %492 = vmatpush.msra.mxu0 %v368
    %493 = vmatmul.f32.gmra.mxu0 %v333
    %v494 = vpop.f32.mrf.mxu0
    %v495 = vadd.f32 %v434, %v494
    %496 = vdwg.mxu0
    %497 = vmatpush.msra.mxu0 %v430
    %498 = vmatpush.msra.mxu0 %v428
    %499 = vmatpush.msra.mxu0 %v426
    %500 = vmatpush.msra.mxu0 %v424
    %501 = vmatpush.msra.mxu0 %v422
    %502 = vmatpush.msra.mxu0 %v420
    %503 = vmatpush.msra.mxu0 %v418
    %504 = vmatpush.msra.mxu0 %v416
    %505 = vmatpush.msra.mxu0 %v414
    %506 = vmatpush.msra.mxu0 %v412
    %507 = vmatpush.msra.mxu0 %v410
    %508 = vmatpush.msra.mxu0 %v408
    %509 = vmatpush.msra.mxu0 %v406
    %510 = vmatpush.msra.mxu0 %v404
    %511 = vmatpush.msra.mxu0 %v402
    %512 = vmatpush.msra.mxu0 %v400
    %513 = vmatmul.f32.gmra.mxu0 %v334
    %v514 = vpop.f32.mrf.mxu0
    %v515 = vadd.f32 %v495, %v514
    %516 = vdwg.mxu0
    %v517 = vmax.f32 %v515, -20.0
    %v518 = vmin.f32 %v517, 2.0
    %v519 = vmul.f32 %v518, 1.442695
    %v520 = vpow.pop %v519
    %s521 = sld [smem:[#allocation2]]
    %v522 = vstv %s521
    %v523 = vmul.f32 %v520, %v522
    %v524 = vadd.f32 %v475, %v523
    %v525 = vtanh.pop %v524
    %v526 = vlaneseq
    %v527 = vand.u32 %v526, 127
    %vm528 = vcmp.lt.s32.totalorder %v527, 4
    %v529 = vmul.f32 %v525, %v525
    %v530 = vsub.f32 1.0, %v529
    %v531 = vadd.f32 %v530, 1e-06
    %v532 = vlog2.pop %v531
    %v533 = vmul.f32 %v532, 0.6931472
    %v534 = vadd.f32 %v518, %v533
    %v535 = vsub.f32 0.0, %v534
    %v536 = vsel %vm528, %v535, 0.0
    %537 = vadd.xlane.f32.xlu0 %v536
    %v538 = vpop.xlane.xlu0 %537
    %s539 = smul.f32 %s521, -0.5
    %s540 = smul.f32 %s539, %s521
    %s541 = ssub.f32 %s540, 0.9189385
    %s542 = smul.f32 %s541, 4.0
    %v543 = vstv %s542
    %v544 = vadd.f32 %v538, %v543
    %vm545 = vcmp.eq.s32.totalorder %v527, 4
    %v546 = vsel %vm545, %v544, 0.0
    %v547 = vsel %vm528, %v525, %v546
    %548 = vst [vmem:[#allocation11] sm:$0xff] %v547
    // Predicated region
    $region50: #{tpu_custom_call.1} parent=1 // pred_check
      _
    $region51: #{tpu_custom_call.1} parent=1 // pred_check_branch
      %550 = sbr.rel (0) target = $region53
    $region52: #{tpu_custom_call.1} parent=1 // pred_region
      %552 = vsyncadd [#allocation5], 0
      %s554 = sshll.u32 [#allocation11], 4
      %s555 = int_to_ptr.vmem [resolvable:$true] %s554
      %s556 = sshll.u32 %s8, 4
      %s557 = int_to_ptr.hbm [resolvable:$true] %s556
      %559 = dma.vmem_to_hbm [thread:$0]  %s555, 128, %s557, [#allocation5]
    $region53: #{tpu_custom_call.1} parent=1 // pred_fallthru
      _
    // Predicated region
    $region54: #{tpu_custom_call.1} parent=1 // pred_check
      _
    $region55: #{tpu_custom_call.1} parent=1 // pred_check_branch
      %561 = sbr.rel (0) target = $region57
    $region56: #{tpu_custom_call.1} parent=1 // pred_region
      %563 = dma.done [#allocation5], 128
    $region57: #{tpu_custom_call.1} parent=1 // pred_fallthru
      _
    %564 = vsyncpa [#allocation4], 1
    %565 = vsyncpa [#allocation7], 1
    %566 = vsyncpa [#allocation10], 1
    %567 = vsyncpa [#allocation5], 1

</llo_original>
